<compile_context>
chip_gen: v7x
topology: tpu7x:2x2x1
jax: 0.10.0
libtpu: 0.0.40
codegen_flags: <defaults>
</compile_context>

<pallas_src>
import functools

import numpy as np
import jax
import jax.numpy as jnp
from jax.experimental import pallas as pl
from jax.experimental.pallas import tpu as pltpu


def _round_up(x, m):
    return ((x + m - 1) // m) * m


def _coalesce_kernel(pair_ids_ref, attr_t_ref, out_ref, *, tile_p):
    """One P-tile of the dense coalesce.

    pair_ids_ref : (Ep, 1) int32   flattened pair index p = src*N + dst
                                   (padded edges carry -1 and never match)
    attr_t_ref   : (Daug, Ep) f32  rows 0..D-1 = edge_attr^T, row D = ones
                                   (edge-count marker), remaining rows zero pad
    out_ref      : (Daug, TP) f32  this P-tile of the dense (Daug, P_pad)
                                   result; row D of the full result is the
                                   per-pair edge multiplicity (>0 <=> present)
    """
    p_start = pl.program_id(0) * tile_p
    ep = attr_t_ref.shape[1]

    # Rebuild the (Ep, TP) one-hot for this tile in-register; never in HBM.
    col = jax.lax.broadcasted_iota(jnp.int32, (ep, tile_p), 1) + p_start
    onehot = (pair_ids_ref[...] == col).astype(jnp.float32)        # (Ep, TP)

    # (Daug, Ep) x (Ep, TP) -> (Daug, TP): contraction over edges on the MXU,
    # no explicit transpose of the big operand, P (lanes) is the output minor
    # axis, and the counts row rides along in the same matmul for free.
    out_ref[...] = jax.lax.dot_general(
        attr_t_ref[...], onehot,
        dimension_numbers=(((1,), (0,)), ((), ())),
        preferred_element_type=jnp.float32)


def add_full_graph_edge_encoder(edge_index, edge_attr, bias, num_nodes):
    """JAX/Pallas equivalent of AddFullGraphEdgeEncoder.forward.

    edge_index : (2, E) int32
    edge_attr  : (E, D) float32 or None
    bias       : (D,)   float32 (the module's self-loop fill-value parameter)
    Returns (full_edge_index (2, E_out) numpy, coalesced_attr (E_out, D) numpy).
    """
    n = int(num_nodes)
    e = int(edge_index.shape[1])
    d = int(bias.shape[0])
    p = n * n

    if edge_attr is None:
        edge_attr = jnp.zeros((e, d), jnp.float32)
    edge_attr = edge_attr.astype(jnp.float32)
    bias = bias.astype(jnp.float32)

    # --- glue: append self loops as ordinary edges with attr = bias ----------
    # NOTE: pair index is int32; for N > ~46k (N^2 > 2^31) it would overflow.
    pair_ids = edge_index[0].astype(jnp.int32) * n + edge_index[1].astype(jnp.int32)
    loop_ids = jnp.arange(n, dtype=jnp.int32) * (n + 1)            # diagonal pairs
    all_ids = jnp.concatenate([pair_ids, loop_ids])                # (E + N,)
    all_attr = jnp.concatenate(
        [edge_attr, jnp.tile(bias[None, :], (n, 1))], axis=0)      # (E + N, D)

    e_tot = e + n
    ep = _round_up(max(e_tot, 8), 128)      # lane-aligned edge count (lhs minor axis)
    daug = _round_up(d + 1, 8)              # D attr rows + 1 counts row, padded
    p_pad = _round_up(p, 128)               # lane-aligned output pair axis

    ids_pad = jnp.full((ep, 1), -1, jnp.int32).at[:e_tot, 0].set(all_ids)
    attr_t = jnp.zeros((daug, ep), jnp.float32)
    attr_t = attr_t.at[:d, :e_tot].set(all_attr.T)
    attr_t = attr_t.at[d, :e_tot].set(1.0)  # counts folded into the matmul

    # --- tiling over the (padded) P = N*N pair axis ---------------------------
    # Tile width: multiple of 128 (or full padded extent when small), capped at
    # 2048 lanes and sized so the (Ep, TP) one-hot intermediate stays ~2 MiB.
    onehot_budget = 2 * 1024 * 1024
    max_tp = max(128, (onehot_budget // (ep * 4)) // 128 * 128)
    tile_p = min(p_pad, 2048, max_tp)
    grid = (pl.cdiv(p_pad, tile_p),)

    kernel = functools.partial(_coalesce_kernel, tile_p=tile_p)

    dense_t = pl.pallas_call(
        kernel,
        grid=grid,
        out_shape=jax.ShapeDtypeStruct((daug, p_pad), jnp.float32),
        in_specs=[
            # Constant block index across the grid: fetched once, VMEM-resident.
            pl.BlockSpec((ep, 1), lambda j: (0, 0)),
            pl.BlockSpec((daug, ep), lambda j: (0, 0)),
        ],
        out_specs=pl.BlockSpec((daug, tile_p), lambda j: (0, j)),
        compiler_params=pltpu.CompilerParams(
            dimension_semantics=("parallel",),
            vmem_limit_bytes=32 * 1024 * 1024),
    )(ids_pad, attr_t)

    # --- extraction of the coalesced edge list ---------------------------------
    # TODO(synk): variable-length nonzero compaction has no Pallas equivalent
    # (data-dependent output size); only the (P,) counts row is copied to host,
    # and the selected attr columns are gathered on device before transfer.
    counts = np.asarray(jax.device_get(dense_t[d, :p]))             # (P,) exact ints
    present = np.nonzero(counts > 0.5)[0].astype(np.int32)          # row-major sorted
    full_edge_index = np.stack([present // n, present % n], axis=0)

    sel = jnp.take(dense_t[:d, :], jnp.asarray(present), axis=1)    # (D, E_out) on device
    coalesced_attr = np.asarray(jax.device_get(sel.T))              # (E_out, D)
    return full_edge_index, coalesced_attr


def _reference(edge_index, edge_attr, bias, num_nodes):
    """Pure numpy reference of add_self_loops(fill=bias) + coalesce(sum)."""
    n = int(num_nodes)
    d = bias.shape[0]
    ei = np.asarray(edge_index)
    ea = np.zeros((ei.shape[1], d), np.float32) if edge_attr is None \
        else np.asarray(edge_attr, np.float32)
    loops = np.stack([np.arange(n), np.arange(n)], axis=0)
    ei = np.concatenate([ei, loops], axis=1)
    ea = np.concatenate(
        [ea, np.tile(np.asarray(bias, np.float32)[None, :], (n, 1))], axis=0)
    pair = ei[0] * n + ei[1]
    uniq, inv = np.unique(pair, return_inverse=True)
    attr = np.zeros((uniq.shape[0], d), np.float32)
    np.add.at(attr, inv, ea)
    full_ei = np.stack([uniq // n, uniq % n], axis=0)
    return full_ei, attr


if __name__ == "__main__":
    key = jax.random.PRNGKey(0)
    k_bias, k_src, k_dst, k_attr = jax.random.split(key, 4)

    num_nodes = 8
    out_dim = 32
    num_edges = 12          # with possible duplicates / existing self loops

    # Deterministic "xavier-like" init of the bias parameter (shape (out_dim,)).
    std = float(np.sqrt(2.0 / (1.0 + out_dim)))
    bias = std * jax.random.normal(k_bias, (out_dim,), jnp.float32)

    src = jax.random.randint(k_src, (num_edges,), 0, num_nodes, jnp.int32)
    dst = jax.random.randint(k_dst, (num_edges,), 0, num_nodes, jnp.int32)
    edge_index = jnp.stack([src, dst], axis=0)                    # (2, E)
    edge_attr = jax.random.normal(k_attr, (num_edges, out_dim), jnp.float32)

    full_ei, coalesced = add_full_graph_edge_encoder(
        edge_index, edge_attr, bias, num_nodes)
    jax.block_until_ready(jnp.asarray(coalesced))

    ref_ei, ref_attr = _reference(edge_index, edge_attr, bias, num_nodes)
    assert np.array_equal(full_ei, ref_ei), "edge index mismatch"
    np.testing.assert_allclose(coalesced, ref_attr, rtol=1e-5, atol=1e-5)

    print("KERNEL_OK")
</pallas_src>

<mosaic_0001>
module attributes {stable_mosaic.version = 11 : i64} {
  func.func @_coalesce_kernel(%arg0: i32, %arg1: memref<128x1xi32, #tpu.memory_space<vmem>>, %arg2: memref<40x128xf32, #tpu.memory_space<vmem>>, %arg3: memref<40x128xf32, #tpu.memory_space<vmem>>) attributes {dimension_semantics = [#tpu.dimension_semantics<parallel>], iteration_bounds = array<i64: 1>, scalar_prefetch = 0 : i64, scratch_operands = 0 : i64, tpu.core_type = #tpu.core_type<tc>, window_params = [{pipeline_mode = #tpu.pipeline_mode<synchronous>, transform_indices = @transform_0, window_bounds = array<i64: 128, 1>}, {pipeline_mode = #tpu.pipeline_mode<synchronous>, transform_indices = @transform_1, window_bounds = array<i64: 40, 128>}, {transform_indices = @transform_2, window_bounds = array<i64: 40, 128>}]} {
    %c128_i32 = arith.constant 128 : i32
    %0 = arith.muli %arg0, %c128_i32 : i32
    %1 = tpu.iota {dimensions = array<i32: 1>} : vector<128x128xi32>
    %2 = vector.broadcast %0 : i32 to vector<128x128xi32>
    %3 = arith.addi %1, %2 : vector<128x128xi32>
    %c0 = arith.constant 0 : index
    %c0_0 = arith.constant 0 : index
    %4 = vector.load %arg1[%c0, %c0_0] : memref<128x1xi32, #tpu.memory_space<vmem>>, vector<128x1xi32>
    %5 = vector.broadcast %4 : vector<128x1xi32> to vector<128x128xi32>
    %6 = arith.cmpi eq, %5, %3 : vector<128x128xi32>
    %7 = arith.extui %6 : vector<128x128xi1> to vector<128x128xi32>
    %8 = arith.sitofp %7 : vector<128x128xi32> to vector<128x128xf32>
    %c0_1 = arith.constant 0 : index
    %c0_2 = arith.constant 0 : index
    %9 = vector.load %arg2[%c0_1, %c0_2] : memref<40x128xf32, #tpu.memory_space<vmem>>, vector<40x128xf32>
    %cst = arith.constant dense<0.000000e+00> : vector<40x128xf32>
    %10 = tpu.matmul %9, %8, %cst {dimension_numbers = #tpu.dot_dimension_numbers<[1], [0], [0], [1], [0, 0, 1, 1], [], []>} : vector<40x128xf32>, vector<128x128xf32>, vector<40x128xf32> -> vector<40x128xf32>
    %c0_3 = arith.constant 0 : index
    %c0_4 = arith.constant 0 : index
    %11 = vector.load %arg3[%c0_3, %c0_4] : memref<40x128xf32, #tpu.memory_space<vmem>>, vector<40x128xf32>
    tpu.vector_store %arg3[%c0_3, %c0_4], %10 {strides = array<i32>} : memref<40x128xf32, #tpu.memory_space<vmem>>, vector<40x128xf32>,
    return
  }
  func.func @transform_0(%arg0: i32) -> (i32, i32) {
    %c0_i32 = arith.constant 0 : i32
    %c0_i32_0 = arith.constant 0 : i32
    %c0_i32_1 = arith.constant 0 : i32
    return %c0_i32, %c0_i32_0 : i32, i32
  }
  func.func @transform_1(%arg0: i32) -> (i32, i32) {
    %c0_i32 = arith.constant 0 : i32
    %c0_i32_0 = arith.constant 0 : i32
    %c0_i32_1 = arith.constant 0 : i32
    return %c0_i32, %c0_i32_0 : i32, i32
  }
  func.func @transform_2(%arg0: i32) -> (i32, i32) {
    %c0_i32 = arith.constant 0 : i32
    %c0_i32_0 = arith.constant 0 : i32
    return %c0_i32, %arg0 : i32, i32
  }
}

</mosaic_0001>

<llo_original>
// kernel: tpu_custom_call.1
$region0: #{tpu_custom_call.1}
  #allocation0 [shape = 'u32[]', space=smem, size = 0x4, offset = 0x4, fixed_abs, tag = 'smem constant byte address 0x4 - core index']
  #allocation1 [shape = 'u32[144,128]{1,0:T(1,128)}', space=vmem, size = 0x12000, scoped, tag = 'internal scratch']
  %s0 = inlined_call_operand.vmem [shape: s32[128,1], index: 0, kind: input, shape index: {}]
  %s1 = inlined_call_operand.vmem [shape: f32[40,128], index: 1, kind: input, shape index: {}]
  %s2 = inlined_call_operand.hbm [shape: f32[40,128], index: 2, kind: output, shape index: {}]
  %s3 = sld [smem:[#allocation0]]
  $region18: #{tpu_custom_call.1} parent=0
    _
  %s5 = ssub.s32 1, %s3
  %s6 = scalar_select 0, %s5, %s3
  $region1: #{tpu_custom_call.1} parent=0
    #allocation2 [shape = 'u8[20480]{0}', space=vmem, size = 0x5000, scoped, tag = 'output window, operand 0, single buffered']
    #allocation3 [shape = 's32[1]{0}', space=sflag, size = 0x4, scoped, tag = 'scoped memory for tpu_custom_call.1']
    %7 = vsyncpa [#allocation3], 0
    // Predicated region
    $region2: #{tpu_custom_call.1} parent=1 // pred_check
      _
    $region3: #{tpu_custom_call.1} parent=1 // pred_check_branch
      %9 = sbr.rel (0) target = $region5
    $region4: #{tpu_custom_call.1} parent=1 // pred_region
      _
    $region5: #{tpu_custom_call.1} parent=1 // pred_fallthru
      _
    // Predicated region
    $region6: #{tpu_custom_call.1} parent=1 // pred_check
      _
    $region7: #{tpu_custom_call.1} parent=1 // pred_check_branch
      %11 = sbr.rel (0) target = $region9
    $region8: #{tpu_custom_call.1} parent=1 // pred_region
      _
    $region9: #{tpu_custom_call.1} parent=1 // pred_fallthru
      _
    %s12 = smul.u32 0, 128
    %v13 = vlaneseq
    %v14 = vand.u32 %v13, 127
    %v15 = vstv %s12
    %v16 = vadd.s32 %v14, %v15
    %v17 = vld [vmem:[%s0] sm:$0xff]
    %v18 = vld [vmem:[%s0 + $0x8] sm:$0xff]
    %v19 = vld [vmem:[%s0 + $0x10] sm:$0xff]
    %v20 = vld [vmem:[%s0 + $0x18] sm:$0xff]
    %v21 = vld [vmem:[%s0 + $0x20] sm:$0xff]
    %v22 = vld [vmem:[%s0 + $0x28] sm:$0xff]
    %v23 = vld [vmem:[%s0 + $0x30] sm:$0xff]
    %v24 = vld [vmem:[%s0 + $0x38] sm:$0xff]
    %v25 = vld [vmem:[%s0 + $0x40] sm:$0xff]
    %v26 = vld [vmem:[%s0 + $0x48] sm:$0xff]
    %v27 = vld [vmem:[%s0 + $0x50] sm:$0xff]
    %v28 = vld [vmem:[%s0 + $0x58] sm:$0xff]
    %v29 = vld [vmem:[%s0 + $0x60] sm:$0xff]
    %v30 = vld [vmem:[%s0 + $0x68] sm:$0xff]
    %v31 = vld [vmem:[%s0 + $0x70] sm:$0xff]
    %v32 = vld [vmem:[%s0 + $0x78] sm:$0xff]
    %33 = vset.pattern.permute.xlu0 0
    %34 = vperm.xlu0 %33, %v17
    %v35 = vpop.permute.xlu0 %34
    %36 = vset.pattern.permute.xlu0 0
    %37 = vperm.xlu0 %36, %v18
    %v38 = vpop.permute.xlu0 %37
    %39 = vset.pattern.permute.xlu0 0
    %40 = vperm.xlu0 %39, %v19
    %v41 = vpop.permute.xlu0 %40
    %42 = vset.pattern.permute.xlu0 0
    %43 = vperm.xlu0 %42, %v20
    %v44 = vpop.permute.xlu0 %43
    %45 = vset.pattern.permute.xlu0 0
    %46 = vperm.xlu0 %45, %v21
    %v47 = vpop.permute.xlu0 %46
    %48 = vset.pattern.permute.xlu0 0
    %49 = vperm.xlu0 %48, %v22
    %v50 = vpop.permute.xlu0 %49
    %51 = vset.pattern.permute.xlu0 0
    %52 = vperm.xlu0 %51, %v23
    %v53 = vpop.permute.xlu0 %52
    %54 = vset.pattern.permute.xlu0 0
    %55 = vperm.xlu0 %54, %v24
    %v56 = vpop.permute.xlu0 %55
    %57 = vset.pattern.permute.xlu0 0
    %58 = vperm.xlu0 %57, %v25
    %v59 = vpop.permute.xlu0 %58
    %60 = vset.pattern.permute.xlu0 0
    %61 = vperm.xlu0 %60, %v26
    %v62 = vpop.permute.xlu0 %61
    %63 = vset.pattern.permute.xlu0 0
    %64 = vperm.xlu0 %63, %v27
    %v65 = vpop.permute.xlu0 %64
    %66 = vset.pattern.permute.xlu0 0
    %67 = vperm.xlu0 %66, %v28
    %v68 = vpop.permute.xlu0 %67
    %69 = vset.pattern.permute.xlu0 0
    %70 = vperm.xlu0 %69, %v29
    %v71 = vpop.permute.xlu0 %70
    %72 = vset.pattern.permute.xlu0 0
    %73 = vperm.xlu0 %72, %v30
    %v74 = vpop.permute.xlu0 %73
    %75 = vset.pattern.permute.xlu0 0
    %76 = vperm.xlu0 %75, %v31
    %v77 = vpop.permute.xlu0 %76
    %78 = vset.pattern.permute.xlu0 0
    %79 = vperm.xlu0 %78, %v32
    %v80 = vpop.permute.xlu0 %79
    %vm81 = vcmp.eq.s32.totalorder %v35, %v16
    %vm82 = vcmp.eq.s32.totalorder %v38, %v16
    %vm83 = vcmp.eq.s32.totalorder %v41, %v16
    %vm84 = vcmp.eq.s32.totalorder %v44, %v16
    %vm85 = vcmp.eq.s32.totalorder %v47, %v16
    %vm86 = vcmp.eq.s32.totalorder %v50, %v16
    %vm87 = vcmp.eq.s32.totalorder %v53, %v16
    %vm88 = vcmp.eq.s32.totalorder %v56, %v16
    %vm89 = vcmp.eq.s32.totalorder %v59, %v16
    %vm90 = vcmp.eq.s32.totalorder %v62, %v16
    %vm91 = vcmp.eq.s32.totalorder %v65, %v16
    %vm92 = vcmp.eq.s32.totalorder %v68, %v16
    %vm93 = vcmp.eq.s32.totalorder %v71, %v16
    %vm94 = vcmp.eq.s32.totalorder %v74, %v16
    %vm95 = vcmp.eq.s32.totalorder %v77, %v16
    %vm96 = vcmp.eq.s32.totalorder %v80, %v16
    %v97 = vsel %vm81, 1, 0
    %v98 = vsel %vm82, 1, 0
    %v99 = vsel %vm83, 1, 0
    %v100 = vsel %vm84, 1, 0
    %v101 = vsel %vm85, 1, 0
    %v102 = vsel %vm86, 1, 0
    %v103 = vsel %vm87, 1, 0
    %v104 = vsel %vm88, 1, 0
    %v105 = vsel %vm89, 1, 0
    %v106 = vsel %vm90, 1, 0
    %v107 = vsel %vm91, 1, 0
    %v108 = vsel %vm92, 1, 0
    %v109 = vsel %vm93, 1, 0
    %v110 = vsel %vm94, 1, 0
    %v111 = vsel %vm95, 1, 0
    %v112 = vsel %vm96, 1, 0
    %v113 = vcvt.s32.f32 %v97
    %v114 = vcvt.s32.f32 %v98
    %v115 = vcvt.s32.f32 %v99
    %v116 = vcvt.s32.f32 %v100
    %v117 = vcvt.s32.f32 %v101
    %v118 = vcvt.s32.f32 %v102
    %v119 = vcvt.s32.f32 %v103
    %v120 = vcvt.s32.f32 %v104
    %v121 = vcvt.s32.f32 %v105
    %v122 = vcvt.s32.f32 %v106
    %v123 = vcvt.s32.f32 %v107
    %v124 = vcvt.s32.f32 %v108
    %v125 = vcvt.s32.f32 %v109
    %v126 = vcvt.s32.f32 %v110
    %v127 = vcvt.s32.f32 %v111
    %v128 = vcvt.s32.f32 %v112
    %v129 = vld [vmem:[%s1] sm:$0xff]
    %v130 = vld [vmem:[%s1 + $0x8] sm:$0xff]
    %v131 = vld [vmem:[%s1 + $0x10] sm:$0xff]
    %v132 = vld [vmem:[%s1 + $0x18] sm:$0xff]
    %v133 = vld [vmem:[%s1 + $0x20] sm:$0xff]
    %134 = vmatprep.subr.mxu0 0.0
    %135 = vmatpush1.msra.mxu0 %v113
    %136 = vmatprep.subr.mxu0 0.0
    %137 = vmatpush1.msra.mxu0 %v114
    %138 = vmatprep.subr.mxu0 0.0
    %139 = vmatpush1.msra.mxu0 %v115
    %140 = vmatprep.subr.mxu0 0.0
    %141 = vmatpush1.msra.mxu0 %v116
    %142 = vmatprep.subr.mxu0 0.0
    %143 = vmatpush1.msra.mxu0 %v117
    %144 = vmatprep.subr.mxu0 0.0
    %145 = vmatpush1.msra.mxu0 %v118
    %146 = vmatprep.subr.mxu0 0.0
    %147 = vmatpush1.msra.mxu0 %v119
    %148 = vmatprep.subr.mxu0 0.0
    %149 = vmatpush1.msra.mxu0 %v120
    %150 = vmatprep.subr.mxu0 0.0
    %151 = vmatpush1.msra.mxu0 %v121
    %152 = vmatprep.subr.mxu0 0.0
    %153 = vmatpush1.msra.mxu0 %v122
    %154 = vmatprep.subr.mxu0 0.0
    %155 = vmatpush1.msra.mxu0 %v123
    %156 = vmatprep.subr.mxu0 0.0
    %157 = vmatpush1.msra.mxu0 %v124
    %158 = vmatprep.subr.mxu0 0.0
    %159 = vmatpush1.msra.mxu0 %v125
    %160 = vmatprep.subr.mxu0 0.0
    %161 = vmatpush1.msra.mxu0 %v126
    %162 = vmatprep.subr.mxu0 0.0
    %163 = vmatpush1.msra.mxu0 %v127
    %164 = vmatprep.subr.mxu0 0.0
    %165 = vmatpush1.msra.mxu0 %v128
    %166 = vmatprep.subr.mxu0 0.0
    %167 = vmatpush1.msra.mxu0 0.0
    %168 = vmatprep.subr.mxu0 0.0
    %169 = vmatpush1.msra.mxu0 0.0
    %170 = vmatprep.subr.mxu0 0.0
    %171 = vmatpush1.msra.mxu0 0.0
    %172 = vmatprep.subr.mxu0 0.0
    %173 = vmatpush1.msra.mxu0 0.0
    %174 = vmatprep.subr.mxu0 0.0
    %175 = vmatpush1.msra.mxu0 0.0
    %176 = vmatprep.subr.mxu0 0.0
    %177 = vmatpush1.msra.mxu0 0.0
    %178 = vmatprep.subr.mxu0 0.0
    %179 = vmatpush1.msra.mxu0 0.0
    %180 = vmatprep.subr.mxu0 0.0
    %181 = vmatpush1.msra.mxu0 0.0
    %182 = vmatprep.subr.mxu0 0.0
    %183 = vmatpush1.msra.mxu0 0.0
    %184 = vmatprep.subr.mxu0 0.0
    %185 = vmatpush1.msra.mxu0 0.0
    %186 = vmatprep.subr.mxu0 0.0
    %187 = vmatpush1.msra.mxu0 0.0
    %188 = vmatprep.subr.mxu0 0.0
    %189 = vmatpush1.msra.mxu0 0.0
    %190 = vmatprep.subr.mxu0 0.0
    %191 = vmatpush1.msra.mxu0 0.0
    %192 = vmatprep.subr.mxu0 0.0
    %193 = vmatpush1.msra.mxu0 0.0
    %194 = vmatprep.subr.mxu0 0.0
    %195 = vmatpush1.msra.mxu0 0.0
    %196 = vmatprep.subr.mxu0 0.0
    %197 = vmatpush1.msra.mxu0 0.0
    %198 = vmatprep.mubr.f32.mxu0 0.0
    %199 = vmatmul.mubr.f32.gmra.mrb[0].mxu0 %v129
    %v200 = vpop.f32.mrb[0].mxu0
    %v201 = vadd.f32 0.0, %v200
    %v202 = vpop.f32.mrb[0].mxu0
    %203 = vmatprep.mubr.f32.mxu0 0.0
    %204 = vmatmul.mubr.f32.gmra.mrb[0].mxu0 %v130
    %v205 = vpop.f32.mrb[0].mxu0
    %v206 = vadd.f32 0.0, %v205
    %v207 = vpop.f32.mrb[0].mxu0
    %208 = vmatprep.mubr.f32.mxu0 0.0
    %209 = vmatmul.mubr.f32.gmra.mrb[0].mxu0 %v131
    %v210 = vpop.f32.mrb[0].mxu0
    %v211 = vadd.f32 0.0, %v210
    %v212 = vpop.f32.mrb[0].mxu0
    %213 = vmatprep.mubr.f32.mxu0 0.0
    %214 = vmatmul.mubr.f32.gmra.mrb[0].mxu0 %v132
    %v215 = vpop.f32.mrb[0].mxu0
    %v216 = vadd.f32 0.0, %v215
    %v217 = vpop.f32.mrb[0].mxu0
    %218 = vmatprep.mubr.f32.mxu0 0.0
    %219 = vmatmul.mubr.f32.gmra.mrb[0].mxu0 %v133
    %v220 = vpop.f32.mrb[0].mxu0
    %v221 = vadd.f32 0.0, %v220
    %v222 = vpop.f32.mrb[0].mxu0
    %223 = vdwg.mxu0
    %224 = vst [vmem:[#allocation2] sm:$0xff] %v201
    %225 = vst [vmem:[#allocation2 + $0x8] sm:$0xff] %v206
    %226 = vst [vmem:[#allocation2 + $0x10] sm:$0xff] %v211
    %227 = vst [vmem:[#allocation2 + $0x18] sm:$0xff] %v216
    %228 = vst [vmem:[#allocation2 + $0x20] sm:$0xff] %v221
    // Predicated region
    $region10: #{tpu_custom_call.1} parent=1 // pred_check
      _
    $region11: #{tpu_custom_call.1} parent=1 // pred_check_branch
      %230 = sbr.rel (0) target = $region13
    $region12: #{tpu_custom_call.1} parent=1 // pred_region
      %s232 = ssub.s32 640, 640
      %233 = vsyncadd [#allocation3], %s232
      %s234 = sshll.u32 [#allocation2], 4
      %s235 = int_to_ptr.vmem [resolvable:$true] %s234
      %240 = dma.vmem_to_hbm [thread:$0]  %s235, 640, %s2, [#allocation3], 128, 128, 8
    $region13: #{tpu_custom_call.1} parent=1 // pred_fallthru
      _
    // Predicated region
    $region14: #{tpu_custom_call.1} parent=1 // pred_check
      _
    $region15: #{tpu_custom_call.1} parent=1 // pred_check_branch
      %242 = sbr.rel (0) target = $region17
    $region16: #{tpu_custom_call.1} parent=1 // pred_region
      %243 = dma.done [#allocation3], 640
    $region17: #{tpu_custom_call.1} parent=1 // pred_fallthru
      _
    %244 = vsyncpa [#allocation3], 1

</llo_original>
